<compile_context>
chip_gen: v7x
topology: tpu7x:2x2x1
jax: 0.10.0
libtpu: 0.0.40
codegen_flags: <defaults>
</compile_context>

<pallas_src>
import functools

import jax
import jax.numpy as jnp
from jax import lax
from jax.experimental import pallas as pl
from jax.experimental.pallas import tpu as pltpu


def _round_up(v, m):
    return ((v + m - 1) // m) * m


def _vmem_limits():
    """Generation-aware VMEM budgets (v5e/v6e: 128 MiB parts, v7x: 64 MiB)."""
    cap = 64 * 1024 * 1024
    try:
        info = pltpu.get_tpu_info()
        cap = int(getattr(info, "vmem_capacity_bytes", cap))
    except Exception:
        pass
    limit = min(int(cap * 3 // 4), 100 * 1024 * 1024)    # scoped VMEM limit
    budget = int(cap // 2)                               # edge-tile working set
    return limit, budget


def _choose_edge_tile(num_edges, n_pad, hd, num_heads, edge_dim, acc_w,
                      budget_bytes):
    # Resident (grid-invariant) VMEM: bf16 Q / [K|V] (single-buffered), the
    # resident f32 accumulator output block (assume double-buffered), weights
    # and head-indicator matrices.
    resident = (n_pad * 3 * hd * 2
                + 2 * n_pad * acc_w * 4
                + 4 * (edge_dim * hd + num_heads * edge_dim
                       + edge_dim * edge_dim + 2 * hd * num_heads
                       + 4 * edge_dim))
    avail = max(budget_bytes - resident, 1 << 20)
    # Per-edge-row bytes: int32 iota + two bf16 one-hots over n_pad, f32 edge
    # activations, bf16 payload, double-buffered eattr in / bf16 e_pre out.
    per_edge = (8 * n_pad
                + 4 * (6 * hd + 4 * num_heads)
                + 2 * acc_w
                + 8 * edge_dim + 4 * edge_dim)
    tile = max(8, min(avail // max(per_edge, 1), 2048))
    if tile >= 256:
        tile = (tile // 256) * 256      # fill the 256x256 MXU (v6e/v7x)
    elif tile >= 128:
        tile = 128                      # v5e 128x128 MXU
    else:
        tile = max(8, (tile // 8) * 8)
    return int(min(tile, _round_up(max(num_edges, 8), 8)))


def _inv_spec(shape):
    """BlockSpec for a grid-invariant operand; avoid double-buffering it."""
    index_map = lambda c, t: (0,) * len(shape)
    if hasattr(pl, "Buffered"):
        try:
            return pl.BlockSpec(shape, index_map, pipeline_mode=pl.Buffered(1))
        except TypeError:               # older jax without pipeline_mode
            pass
    return pl.BlockSpec(shape, index_map)


def _batch_norm(v, gamma, beta, eps=1e-5):
    # nn.BatchNorm1d in training mode: per-feature batch mean / biased var.
    mean = jnp.mean(v, axis=0, keepdims=True)
    var = jnp.mean((v - mean) ** 2, axis=0, keepdims=True)
    return (v - mean) * lax.rsqrt(var + eps) * gamma + beta


# ----------------------- Phase 0: Q / [K|V] projection -----------------------
def qkv_kernel(x_ref, wq_ref, wkv_ref, q_ref, kv_ref):
    x = x_ref[...]
    q_ref[...] = jnp.dot(x, wq_ref[...],
                         preferred_element_type=jnp.float32).astype(q_ref.dtype)
    kv_ref[...] = jnp.dot(x, wkv_ref[...],
                          preferred_element_type=jnp.float32).astype(kv_ref.dtype)


# ------------------- Phase 1: attention scatter + edge path ------------------
def attn_scatter_kernel(src_ref, dst_ref, eattr_ref, q_ref, kv_ref,
                        hsum_ref, hexp_ref, we_ref,
                        w_ep_ref, b_ep_ref, w_oe_ref, b_oe_ref,
                        acc_ref, e_pre_ref,
                        *, num_heads, head_dim):
    f32 = jnp.float32
    bf16 = jnp.bfloat16
    H, D = num_heads, head_dim
    HD = H * D

    t = pl.program_id(1)                       # 'arbitrary' (reduction) axis
    n_nodes = q_ref.shape[0]
    tile_e = src_ref.shape[0]
    acc_w = acc_ref.shape[-1]

    @pl.when(t == 0)
    def _init():
        acc_ref[...] = jnp.zeros_like(acc_ref)

    src = src_ref[...]                         # [tE, 1] int32 (-1 for padding)
    dst = dst_ref[...]                         # [tE, 1] int32
    node_ids = lax.broadcasted_iota(jnp.int32, (tile_e, n_nodes), 1)
    src_oh = (node_ids == src).astype(bf16)    # single cast (0/1 exact in bf16)
    dst_oh = (node_ids == dst).astype(bf16)

    # Fused gathers: Q[dst] and [K|V][src] (bf16 MXU, f32 accumulation).
    q_i = jnp.dot(dst_oh, q_ref[...], preferred_element_type=f32)     # [tE,HD]
    kv_j = jnp.dot(src_oh, kv_ref[...], preferred_element_type=f32)   # [tE,2HD]
    k_j = kv_j[:, :HD]
    v_j = kv_j[:, HD:]

    eattr = eattr_ref[...]                                            # [tE,ed]
    proj_e = jnp.dot(eattr, we_ref[...], preferred_element_type=f32)  # [tE,HD]

    # 1/sqrt(d) already folded into the Q weight.
    sf = q_i * k_j * proj_e                                           # [tE,HD]
    # Per-head sum via an indicator-matrix matmul (MXU) instead of H slice/sum
    # relayouts on the XLU.
    score = jnp.dot(sf, hsum_ref[...], preferred_element_type=f32)    # [tE,H]

    # Edge output path fused here: edge_project -> O_e -> residual (BN later).
    e = jnp.dot(score, w_ep_ref[...], preferred_element_type=f32) + b_ep_ref[...]
    e = jnp.dot(e, w_oe_ref[...], preferred_element_type=f32) + b_oe_ref[...]
    e_pre_ref[...] = (eattr + e).astype(e_pre_ref.dtype)

    s = jnp.exp(jnp.clip(score, -5.0, 5.0))                           # [tE,H]
    s_full = jnp.dot(s, hexp_ref[...], preferred_element_type=f32)    # [tE,HD]
    msg = v_j * s_full

    # Lane-dense payload padded up to the 128-aligned accumulator width.
    pad_w = acc_w - (HD + H)
    parts = [msg, s]
    if pad_w > 0:
        parts.append(jnp.zeros((tile_e, pad_w), f32))
    payload = jnp.concatenate(parts, axis=-1).astype(bf16)            # [tE,acc_w]

    # Single fused scatter-add (message numerator AND softmax denominator),
    # contracting the edge axis directly into the resident output block.
    acc_ref[...] += lax.dot_general(
        dst_oh, payload,
        dimension_numbers=(((0,), (0,)), ((), ())),
        preferred_element_type=f32)[None]


# --------------------- Phase 2a: node path post-processing -------------------
def node_post_kernel(x_ref, acc_ref, hexp_ref, w_oh_ref, b_oh_ref,
                     g1h_ref, b1h_ref, w_h1_ref, b_h1_ref, w_h2_ref, b_h2_ref,
                     g2h_ref, b2h_ref, h_out_ref,
                     *, num_heads, head_dim, n_split):
    f32 = jnp.float32
    HD = num_heads * head_dim

    # Combine the per-split (per-TensorCore) partial accumulators.
    acc = acc_ref[0]
    for c in range(1, n_split):
        acc = acc + acc_ref[c]

    h_num = acc[:, :HD]                         # sum_e dst_oh*(V_j*exp(score))
    z = acc[:, HD:HD + num_heads]               # sum_e dst_oh*exp(score)
    inv = pl.reciprocal(z + 1e-6, approx=True)  # EUP slot -> ~free
    h_attn = h_num * jnp.dot(inv, hexp_ref[...], preferred_element_type=f32)

    h = jnp.dot(h_attn, w_oh_ref[...], preferred_element_type=f32) + b_oh_ref[...]
    h = x_ref[...] + h                          # O_h + residual
    h = _batch_norm(h, g1h_ref[...], b1h_ref[...])
    h_in2 = h
    h = jnp.dot(h, w_h1_ref[...], preferred_element_type=f32) + b_h1_ref[...]
    h = jnp.maximum(h, 0.0)
    h = jnp.dot(h, w_h2_ref[...], preferred_element_type=f32) + b_h2_ref[...]
    h_out_ref[...] = _batch_norm(h_in2 + h, g2h_ref[...], b2h_ref[...])


# --------------------- Phase 2b: edge path post-processing -------------------
def edge_post_kernel(e_pre_ref, g1e_ref, b1e_ref, w_e1_ref, b_e1_ref,
                     w_e2_ref, b_e2_ref, g2e_ref, b2e_ref, e_out_ref):
    f32 = jnp.float32
    e = e_pre_ref[...].astype(f32)              # residual already applied
    e = _batch_norm(e, g1e_ref[...], b1e_ref[...])
    e_in2 = e
    e = jnp.dot(e, w_e1_ref[...], preferred_element_type=f32) + b_e1_ref[...]
    e = jnp.maximum(e, 0.0)
    e = jnp.dot(e, w_e2_ref[...], preferred_element_type=f32) + b_e2_ref[...]
    e_out_ref[...] = _batch_norm(e_in2 + e, g2e_ref[...], b2e_ref[...])


# ---------------------------------- wrapper ----------------------------------
def graph_transformer_edge_layer(x, edge_index, edge_attr, params, num_heads,
                                 *, edge_tile=None, n_split=2):
    N, in_dim = x.shape
    E = edge_index.shape[1]
    edge_dim = edge_attr.shape[1]
    out_dim = params["w_oh"].shape[0]
    H = num_heads
    assert out_dim % H == 0
    D = out_dim // H
    HD = out_dim
    ACC_W = _round_up(HD + H, 128)              # lane-dense accumulator width

    vmem_limit, tile_budget = _vmem_limits()

    # ---- padding ------------------------------------------------------------
    N_pad = _round_up(max(N, 8), 8)
    x_p = jnp.pad(x, ((0, N_pad - N), (0, 0)))

    if edge_tile is None:
        edge_tile = _choose_edge_tile(E, N_pad, HD, H, edge_dim, ACC_W,
                                      tile_budget)
    n_split = max(1, int(n_split))
    E_pad = _round_up(max(E, edge_tile), n_split * edge_tile)
    n_tiles = E_pad // (n_split * edge_tile)
    pad_e = E_pad - E
    src = jnp.pad(edge_index[0].astype(jnp.int32), (0, pad_e),
                  constant_values=-1).reshape(E_pad, 1)
    dst = jnp.pad(edge_index[1].astype(jnp.int32), (0, pad_e),
                  constant_values=-1).reshape(E_pad, 1)
    eattr_p = jnp.pad(edge_attr, ((0, pad_e), (0, 0)))

    # Per-head indicator matrices (head-sum / head-expand as MXU matmuls).
    head_ids = jnp.arange(HD, dtype=jnp.int32) // D
    head_sum = (head_ids[:, None] == jnp.arange(H, dtype=jnp.int32)[None, :]
                ).astype(jnp.float32)                      # [HD, H]
    head_expand = head_sum.T                               # [H, HD]

    # 1/sqrt(d) folded into the Q weight; K/V fused into one projection.
    sqrt_d = jnp.float32(D) ** 0.5
    wq_scaled = params["wq"] / sqrt_d
    wkv = jnp.concatenate([params["wk"], params["wv"]], axis=1)

    vmem = pl.BlockSpec(memory_space=pltpu.MemorySpace.VMEM)

    # ---- Phase 0: hoisted Q / [K|V] projection (bf16) -------------------------
    # TODO(synk): tile over node rows for very large N.
    q_bf, kv_bf = pl.pallas_call(
        qkv_kernel,
        in_specs=[vmem, vmem, vmem],
        out_specs=(vmem, vmem),
        out_shape=(jax.ShapeDtypeStruct((N_pad, HD), jnp.bfloat16),
                   jax.ShapeDtypeStruct((N_pad, 2 * HD), jnp.bfloat16)),
        compiler_params=pltpu.CompilerParams(vmem_limit_bytes=vmem_limit),
    )(x_p, wq_scaled, wkv)

    # ---- Phase 1: edge-tiled attention + fused edge output path --------------
    kernel1 = functools.partial(attn_scatter_kernel, num_heads=H, head_dim=D)
    edge_map = lambda c, t: (c * n_tiles + t, 0)

    acc_out, e_pre = pl.pallas_call(
        kernel1,
        grid_spec=pltpu.PrefetchScalarGridSpec(
            num_scalar_prefetch=0,
            grid=(n_split, n_tiles),
            in_specs=[
                pl.BlockSpec((edge_tile, 1), edge_map),            # src
                pl.BlockSpec((edge_tile, 1), edge_map),            # dst
                pl.BlockSpec((edge_tile, edge_dim), edge_map),     # edge_attr
                _inv_spec((N_pad, HD)),                            # Q (bf16)
                _inv_spec((N_pad, 2 * HD)),                        # [K|V] (bf16)
                _inv_spec((HD, H)),                                # head_sum
                _inv_spec((H, HD)),                                # head_expand
                _inv_spec((edge_dim, HD)),                         # we
                _inv_spec((H, edge_dim)),                          # w_ep
                _inv_spec((1, edge_dim)),                          # b_ep
                _inv_spec((edge_dim, edge_dim)),                   # w_oe
                _inv_spec((1, edge_dim)),                          # b_oe
            ],
            out_specs=(
                pl.BlockSpec((1, N_pad, ACC_W), lambda c, t: (c, 0, 0)),
                pl.BlockSpec((edge_tile, edge_dim), edge_map),
            ),
        ),
        out_shape=(
            jax.ShapeDtypeStruct((n_split, N_pad, ACC_W), jnp.float32),
            jax.ShapeDtypeStruct((E_pad, edge_dim), jnp.bfloat16),
        ),
        compiler_params=pltpu.CompilerParams(
            dimension_semantics=("parallel", "arbitrary"),
            vmem_limit_bytes=vmem_limit),
    )(src, dst, eattr_p, q_bf, kv_bf, head_sum, head_expand,
      params["we"], params["w_ep"], params["b_ep"],
      params["w_oe"], params["b_oe"])

    acc_n = acc_out[:, :N, :]
    e_pre_n = e_pre[:E]

    # ---- Phase 2a: node path (combine splits, softmax norm, O_h, BN, FFN, BN)
    # TODO(synk): for large N/E use a gridded two-pass batch-norm instead of
    #   holding the full arrays in VMEM.
    node_kernel = functools.partial(node_post_kernel, num_heads=H, head_dim=D,
                                    n_split=n_split)
    h_out = pl.pallas_call(
        node_kernel,
        in_specs=[vmem] * 13,
        out_specs=vmem,
        out_shape=jax.ShapeDtypeStruct((N, out_dim), jnp.float32),
        compiler_params=pltpu.CompilerParams(vmem_limit_bytes=vmem_limit),
    )(x, acc_n, head_expand,
      params["w_oh"], params["b_oh"], params["g1h"], params["b1h"],
      params["w_h1"], params["b_h1"], params["w_h2"], params["b_h2"],
      params["g2h"], params["b2h"])

    # ---- Phase 2b: edge path (BN, FFN, BN) -----------------------------------
    e_out = pl.pallas_call(
        edge_post_kernel,
        in_specs=[vmem] * 9,
        out_specs=vmem,
        out_shape=jax.ShapeDtypeStruct((E, edge_dim), jnp.float32),
        compiler_params=pltpu.CompilerParams(vmem_limit_bytes=vmem_limit),
    )(e_pre_n, params["g1e"], params["b1e"],
      params["w_e1"], params["b_e1"], params["w_e2"], params["b_e2"],
      params["g2e"], params["b2e"])

    return h_out, e_out


# ---------------------- pure-JAX reference for validation --------------------
def reference(x, edge_index, edge_attr, p, num_heads):
    N = x.shape[0]
    E = edge_index.shape[1]
    out_dim = p["w_oh"].shape[0]
    D = out_dim // num_heads
    src, dst = edge_index[0], edge_index[1]

    Q = (x @ p["wq"]).reshape(N, num_heads, D)
    K = (x @ p["wk"]).reshape(N, num_heads, D)
    V = (x @ p["wv"]).reshape(N, num_heads, D)
    pe = (edge_attr @ p["we"]).reshape(E, num_heads, D)
    K_j, Q_i, V_j = K[src], Q[dst], V[src]
    score = (Q_i * K_j) / (D ** 0.5) * pe
    score = score.sum(-1)
    e_attn = score
    s = jnp.exp(jnp.clip(score, -5.0, 5.0))
    z = jax.ops.segment_sum(s, dst, num_segments=N)
    alpha = s / (z[dst] + 1e-6)
    msg = V_j * alpha[..., None]
    h_attn = jax.ops.segment_sum(msg, dst, num_segments=N).reshape(N, out_dim)

    e = e_attn @ p["w_ep"] + p["b_ep"]
    h = h_attn @ p["w_oh"] + p["b_oh"]
    e = e @ p["w_oe"] + p["b_oe"]
    h = x + h
    e = edge_attr + e
    h = _batch_norm(h, p["g1h"], p["b1h"])
    e = _batch_norm(e, p["g1e"], p["b1e"])
    h2, e2 = h, e
    h = jnp.maximum(h @ p["w_h1"] + p["b_h1"], 0.0) @ p["w_h2"] + p["b_h2"]
    e = jnp.maximum(e @ p["w_e1"] + p["b_e1"], 0.0) @ p["w_e2"] + p["b_e2"]
    h = h2 + h
    e = e2 + e
    h = _batch_norm(h, p["g2h"], p["b2h"])
    e = _batch_norm(e, p["g2e"], p["b2e"])
    return h, e


def init_params(key, in_dim, edge_dim, out_dim, num_heads):
    ks = iter(jax.random.split(key, 32))

    def w(fan_in, fan_out):
        return (jax.random.normal(next(ks), (fan_in, fan_out), jnp.float32)
                / jnp.sqrt(jnp.float32(fan_in)))

    def b(dim):
        return jax.random.normal(next(ks), (1, dim), jnp.float32) * 0.05

    p = {}
    p["wq"] = w(in_dim, out_dim)
    p["wk"] = w(in_dim, out_dim)
    p["wv"] = w(in_dim, out_dim)
    p["we"] = w(edge_dim, out_dim)
    p["w_ep"], p["b_ep"] = w(num_heads, edge_dim), b(edge_dim)
    p["w_oh"], p["b_oh"] = w(out_dim, out_dim), b(out_dim)
    p["w_oe"], p["b_oe"] = w(edge_dim, edge_dim), b(edge_dim)
    p["g1h"], p["b1h"] = jnp.ones((1, out_dim), jnp.float32), jnp.zeros((1, out_dim), jnp.float32)
    p["g1e"], p["b1e"] = jnp.ones((1, edge_dim), jnp.float32), jnp.zeros((1, edge_dim), jnp.float32)
    p["w_h1"], p["b_h1"] = w(out_dim, out_dim * 2), b(out_dim * 2)
    p["w_h2"], p["b_h2"] = w(out_dim * 2, out_dim), b(out_dim)
    p["w_e1"], p["b_e1"] = w(edge_dim, edge_dim * 2), b(edge_dim * 2)
    p["w_e2"], p["b_e2"] = w(edge_dim * 2, edge_dim), b(edge_dim)
    p["g2h"], p["b2h"] = jnp.ones((1, out_dim), jnp.float32), jnp.zeros((1, out_dim), jnp.float32)
    p["g2e"], p["b2e"] = jnp.ones((1, edge_dim), jnp.float32), jnp.zeros((1, edge_dim), jnp.float32)
    return p


if __name__ == "__main__":
    N, E = 8, 32
    in_dim = out_dim = 32
    edge_dim = 16
    num_heads = 4

    key = jax.random.PRNGKey(0)
    kx, ke, ks, kd, kp = jax.random.split(key, 5)
    x = jax.random.normal(kx, (N, in_dim), jnp.float32)
    edge_attr = jax.random.normal(ke, (E, edge_dim), jnp.float32)
    src = jax.random.randint(ks, (E,), 0, N, jnp.int32)
    dst = jax.random.randint(kd, (E,), 0, N, jnp.int32)
    edge_index = jnp.stack([src, dst], axis=0)   # [2, E]

    params = init_params(kp, in_dim, edge_dim, out_dim, num_heads)

    # edge_tile=8, n_split=2 -> grid (2, 2): exercises both the parallel split
    # (per-core accumulators) and the tiled accumulation along 'arbitrary'.
    h_out, e_out = graph_transformer_edge_layer(
        x, edge_index, edge_attr, params, num_heads, edge_tile=8, n_split=2)
    jax.block_until_ready((h_out, e_out))

    h_ref, e_ref = reference(x, edge_index, edge_attr, params, num_heads)
    assert h_out.shape == (N, out_dim) and e_out.shape == (E, edge_dim)
    # bf16 MXU gathers / bf16 e_pre writeback -> bf16-level tolerance.
    assert jnp.allclose(h_out, h_ref, rtol=5e-2, atol=5e-2)
    assert jnp.allclose(e_out, e_ref, rtol=5e-2, atol=5e-2)

    print("KERNEL_OK")
</pallas_src>

<mosaic_0001>
module attributes {stable_mosaic.version = 11 : i64} {
  func.func @qkv_kernel(%arg0: memref<8x32xf32, #tpu.memory_space<vmem>>, %arg1: memref<32x32xf32, #tpu.memory_space<vmem>>, %arg2: memref<32x64xf32, #tpu.memory_space<vmem>>, %arg3: memref<8x32xbf16, #tpu.memory_space<vmem>>, %arg4: memref<8x64xbf16, #tpu.memory_space<vmem>>) attributes {dimension_semantics = [], scalar_prefetch = 0 : i64, scratch_operands = 0 : i64, tpu.core_type = #tpu.core_type<tc>} {
    %c0 = arith.constant 0 : index
    %c0_0 = arith.constant 0 : index
    %0 = vector.load %arg0[%c0, %c0_0] : memref<8x32xf32, #tpu.memory_space<vmem>>, vector<8x32xf32>
    %c0_1 = arith.constant 0 : index
    %c0_2 = arith.constant 0 : index
    %1 = vector.load %arg1[%c0_1, %c0_2] : memref<32x32xf32, #tpu.memory_space<vmem>>, vector<32x32xf32>
    %cst = arith.constant dense<0.000000e+00> : vector<8x32xf32>
    %2 = tpu.matmul %0, %1, %cst {dimension_numbers = #tpu.dot_dimension_numbers<[1], [0], [0], [1], [0, 0, 1, 1], [], []>} : vector<8x32xf32>, vector<32x32xf32>, vector<8x32xf32> -> vector<8x32xf32>
    %3 = arith.truncf %2 : vector<8x32xf32> to vector<8x32xbf16>
    %c0_3 = arith.constant 0 : index
    %c0_4 = arith.constant 0 : index
    %4 = vector.load %arg3[%c0_3, %c0_4] : memref<8x32xbf16, #tpu.memory_space<vmem>>, vector<8x32xbf16>
    tpu.vector_store %arg3[%c0_3, %c0_4], %3 {strides = array<i32>} : memref<8x32xbf16, #tpu.memory_space<vmem>>, vector<8x32xbf16>,
    %c0_5 = arith.constant 0 : index
    %c0_6 = arith.constant 0 : index
    %5 = vector.load %arg2[%c0_5, %c0_6] : memref<32x64xf32, #tpu.memory_space<vmem>>, vector<32x64xf32>
    %cst_7 = arith.constant dense<0.000000e+00> : vector<8x64xf32>
    %6 = tpu.matmul %0, %5, %cst_7 {dimension_numbers = #tpu.dot_dimension_numbers<[1], [0], [0], [1], [0, 0, 1, 1], [], []>} : vector<8x32xf32>, vector<32x64xf32>, vector<8x64xf32> -> vector<8x64xf32>
    %7 = arith.truncf %6 : vector<8x64xf32> to vector<8x64xbf16>
    %c0_8 = arith.constant 0 : index
    %c0_9 = arith.constant 0 : index
    %8 = vector.load %arg4[%c0_8, %c0_9] : memref<8x64xbf16, #tpu.memory_space<vmem>>, vector<8x64xbf16>
    tpu.vector_store %arg4[%c0_8, %c0_9], %7 {strides = array<i32>} : memref<8x64xbf16, #tpu.memory_space<vmem>>, vector<8x64xbf16>,
    return
  }
}

</mosaic_0001>

<llo_original>
// kernel: tpu_custom_call.1
$region0: #{tpu_custom_call.1}
  #allocation0 [shape = 'u32[]', space=smem, size = 0x4, offset = 0x4, fixed_abs, tag = 'smem constant byte address 0x4 - core index']
  #allocation1 [shape = 'u32[144,128]{1,0:T(1,128)}', space=vmem, size = 0x12000, scoped, tag = 'internal scratch']
  %s0 = inlined_call_operand.hbm [shape: f32[8,32], index: 0, kind: input, shape index: {}]
  %s1 = inlined_call_operand.hbm [shape: f32[32,32], index: 1, kind: input, shape index: {}]
  %s2 = inlined_call_operand.hbm [shape: f32[32,64], index: 2, kind: input, shape index: {}]
  %s3 = inlined_call_operand.hbm [shape: bf16[8,32], index: 3, kind: output, shape index: {0}]
  %s4 = inlined_call_operand.hbm [shape: bf16[8,64], index: 4, kind: output, shape index: {1}]
  %5 = xla_tuple %s3, %s4
  %s6 = sld [smem:[#allocation0]]
  $region42: #{tpu_custom_call.1} parent=0
    _
  %s8 = ssub.s32 1, %s6
  %s9 = scalar_select 0, %s8, %s6
  $region1: #{tpu_custom_call.1} parent=0
    #allocation2 [shape = 'u8[4096]{0}', space=vmem, size = 0x1000, scoped, tag = 'input window, operand 0, single buffered']
    #allocation3 [shape = 's32[1]{0}', space=sflag, size = 0x4, scoped, tag = 'scoped memory for tpu_custom_call.1']
    #allocation4 [shape = 's32[1]{0}', space=sflag, size = 0x4, scoped, tag = 'scoped memory for tpu_custom_call.1']
    #allocation5 [shape = 'u8[16384]{0}', space=vmem, size = 0x4000, scoped, tag = 'input window, operand 1, single buffered']
    #allocation6 [shape = 's32[1]{0}', space=sflag, size = 0x4, scoped, tag = 'scoped memory for tpu_custom_call.1']
    #allocation7 [shape = 'u8[16384]{0}', space=vmem, size = 0x4000, scoped, tag = 'input window, operand 2, single buffered']
    #allocation8 [shape = 'u8[2048]{0}', space=vmem, size = 0x800, scoped, tag = 'output window, operand 0, single buffered']
    #allocation9 [shape = 'u8[2048]{0}', space=vmem, size = 0x800, scoped, tag = 'output window, operand 1, single buffered']
    #allocation10 [shape = 's32[1]{0}', space=sflag, size = 0x4, scoped, tag = 'scoped memory for tpu_custom_call.1']
    %10 = vsyncpa [#allocation3], 0
    %11 = vsyncpa [#allocation6], 0
    %12 = vsyncpa [#allocation4], 0
    %13 = vsyncpa [#allocation10], 0
    // Predicated region
    $region2: #{tpu_custom_call.1} parent=1 // pred_check
      _
    $region3: #{tpu_custom_call.1} parent=1 // pred_check_branch
      %15 = sbr.rel (0) target = $region5
    $region4: #{tpu_custom_call.1} parent=1 // pred_region
      %s17 = ssub.s32 128, 128
      %18 = vsyncadd [#allocation3], %s17
      %s20 = sshll.u32 [#allocation2], 4
      %s21 = int_to_ptr.vmem [resolvable:$true] %s20
      %23 = dma.hbm_to_vmem [thread:$0]  %s0, 128, %s21, [#allocation3]
    $region5: #{tpu_custom_call.1} parent=1 // pred_fallthru
      _
    // Predicated region
    $region6: #{tpu_custom_call.1} parent=1 // pred_check
      _
    $region7: #{tpu_custom_call.1} parent=1 // pred_check_branch
      %25 = sbr.rel (0) target = $region9
    $region8: #{tpu_custom_call.1} parent=1 // pred_region
      %s27 = ssub.s32 512, 512
      %28 = vsyncadd [#allocation6], %s27
      %s29 = sshll.u32 [#allocation5], 4
      %s30 = int_to_ptr.vmem [resolvable:$true] %s29
      %35 = dma.hbm_to_vmem [thread:$0]  %s1, 512, %s30, [#allocation6], 128, 128, 8
    $region9: #{tpu_custom_call.1} parent=1 // pred_fallthru
      _
    // Predicated region
    $region10: #{tpu_custom_call.1} parent=1 // pred_check
      _
    $region11: #{tpu_custom_call.1} parent=1 // pred_check_branch
      %37 = sbr.rel (0) target = $region13
    $region12: #{tpu_custom_call.1} parent=1 // pred_region
      %s39 = ssub.s32 512, 512
      %40 = vsyncadd [#allocation6], %s39
      %s41 = sshll.u32 [#allocation7], 4
      %s42 = int_to_ptr.vmem [resolvable:$true] %s41
      %47 = dma.hbm_to_vmem [thread:$0]  %s2, 512, %s42, [#allocation6], 128, 128, 8
    $region13: #{tpu_custom_call.1} parent=1 // pred_fallthru
      _
    // Predicated region
    $region14: #{tpu_custom_call.1} parent=1 // pred_check
      _
    $region15: #{tpu_custom_call.1} parent=1 // pred_check_branch
      %49 = sbr.rel (0) target = $region17
    $region16: #{tpu_custom_call.1} parent=1 // pred_region
      %50 = dma.done [#allocation3], 128
    $region17: #{tpu_custom_call.1} parent=1 // pred_fallthru
      _
    // Predicated region
    $region18: #{tpu_custom_call.1} parent=1 // pred_check
      _
    $region19: #{tpu_custom_call.1} parent=1 // pred_check_branch
      %52 = sbr.rel (0) target = $region21
    $region20: #{tpu_custom_call.1} parent=1 // pred_region
      %53 = dma.done [#allocation6], 512
    $region21: #{tpu_custom_call.1} parent=1 // pred_fallthru
      _
    // Predicated region
    $region22: #{tpu_custom_call.1} parent=1 // pred_check
      _
    $region23: #{tpu_custom_call.1} parent=1 // pred_check_branch
      %55 = sbr.rel (0) target = $region25
    $region24: #{tpu_custom_call.1} parent=1 // pred_region
      %56 = dma.done [#allocation6], 512
    $region25: #{tpu_custom_call.1} parent=1 // pred_fallthru
      _
    %v57 = vld [vmem:[#allocation2] sm:$0xff]
    %v58 = vld [vmem:[#allocation5] sm:$0xff]
    %v59 = vld [vmem:[#allocation5 + $0x8] sm:$0xff]
    %v60 = vld [vmem:[#allocation5 + $0x10] sm:$0xff]
    %v61 = vld [vmem:[#allocation5 + $0x18] sm:$0xff]
    %vm62 = vcmask 261120
    %v64 = vsel %vm62, %v57, 0
    %66 = vmatprep.subr.mxu0 0.0
    %67 = vmatpush1.msra.mxu0 %v58
    %68 = vmatprep.subr.mxu0 0.0
    %69 = vmatpush1.msra.mxu0 %v59
    %70 = vmatprep.subr.mxu0 0.0
    %71 = vmatpush1.msra.mxu0 %v60
    %72 = vmatprep.subr.mxu0 0.0
    %73 = vmatpush1.msra.mxu0 %v61
    %74 = vmatprep.subr.mxu0 0.0
    %75 = vmatpush1.msra.mxu0 0.0
    %76 = vmatprep.subr.mxu0 0.0
    %77 = vmatpush1.msra.mxu0 0.0
    %78 = vmatprep.subr.mxu0 0.0
    %79 = vmatpush1.msra.mxu0 0.0
    %80 = vmatprep.subr.mxu0 0.0
    %81 = vmatpush1.msra.mxu0 0.0
    %82 = vmatprep.subr.mxu0 0.0
    %83 = vmatpush1.msra.mxu0 0.0
    %84 = vmatprep.subr.mxu0 0.0
    %85 = vmatpush1.msra.mxu0 0.0
    %86 = vmatprep.subr.mxu0 0.0
    %87 = vmatpush1.msra.mxu0 0.0
    %88 = vmatprep.subr.mxu0 0.0
    %89 = vmatpush1.msra.mxu0 0.0
    %90 = vmatprep.subr.mxu0 0.0
    %91 = vmatpush1.msra.mxu0 0.0
    %92 = vmatprep.subr.mxu0 0.0
    %93 = vmatpush1.msra.mxu0 0.0
    %94 = vmatprep.subr.mxu0 0.0
    %95 = vmatpush1.msra.mxu0 0.0
    %96 = vmatprep.subr.mxu0 0.0
    %97 = vmatpush1.msra.mxu0 0.0
    %98 = vmatprep.subr.mxu0 0.0
    %99 = vmatpush1.msra.mxu0 0.0
    %100 = vmatprep.subr.mxu0 0.0
    %101 = vmatpush1.msra.mxu0 0.0
    %102 = vmatprep.subr.mxu0 0.0
    %103 = vmatpush1.msra.mxu0 0.0
    %104 = vmatprep.subr.mxu0 0.0
    %105 = vmatpush1.msra.mxu0 0.0
    %106 = vmatprep.subr.mxu0 0.0
    %107 = vmatpush1.msra.mxu0 0.0
    %108 = vmatprep.subr.mxu0 0.0
    %109 = vmatpush1.msra.mxu0 0.0
    %110 = vmatprep.subr.mxu0 0.0
    %111 = vmatpush1.msra.mxu0 0.0
    %112 = vmatprep.subr.mxu0 0.0
    %113 = vmatpush1.msra.mxu0 0.0
    %114 = vmatprep.subr.mxu0 0.0
    %115 = vmatpush1.msra.mxu0 0.0
    %116 = vmatprep.subr.mxu0 0.0
    %117 = vmatpush1.msra.mxu0 0.0
    %118 = vmatprep.subr.mxu0 0.0
    %119 = vmatpush1.msra.mxu0 0.0
    %120 = vmatprep.subr.mxu0 0.0
    %121 = vmatpush1.msra.mxu0 0.0
    %122 = vmatprep.subr.mxu0 0.0
    %123 = vmatpush1.msra.mxu0 0.0
    %124 = vmatprep.subr.mxu0 0.0
    %125 = vmatpush1.msra.mxu0 0.0
    %126 = vmatprep.subr.mxu0 0.0
    %127 = vmatpush1.msra.mxu0 0.0
    %128 = vmatprep.subr.mxu0 0.0
    %129 = vmatpush1.msra.mxu0 0.0
    %130 = vmatprep.mubr.f32.mxu0 0.0
    %131 = vmatmul.mubr.f32.gmra.mrb[0].mxu0 %v64
    %v132 = vpop.f32.mrb[0].mxu0
    %v133 = vadd.f32 0.0, %v132
    %v134 = vpop.f32.mrb[0].mxu0
    %135 = vdwg.mxu0
    %v136 = vpack.c.bf16 %v133, %v133
    %vm137 = vcmask 257024
    %138 = vst.msk [vmem:[#allocation8] sm:$0xf] %vm137, %v136
    %v139 = vld [vmem:[#allocation7] sm:$0xff]
    %v140 = vld [vmem:[#allocation7 + $0x8] sm:$0xff]
    %v141 = vld [vmem:[#allocation7 + $0x10] sm:$0xff]
    %v142 = vld [vmem:[#allocation7 + $0x18] sm:$0xff]
    %143 = vmatprep.subr.mxu0 0.0
    %144 = vmatpush1.msra.mxu0 %v139
    %145 = vmatprep.subr.mxu0 0.0
    %146 = vmatpush1.msra.mxu0 %v140
    %147 = vmatprep.subr.mxu0 0.0
    %148 = vmatpush1.msra.mxu0 %v141
    %149 = vmatprep.subr.mxu0 0.0
    %150 = vmatpush1.msra.mxu0 %v142
    %151 = vmatprep.subr.mxu0 0.0
    %152 = vmatpush1.msra.mxu0 0.0
    %153 = vmatprep.subr.mxu0 0.0
    %154 = vmatpush1.msra.mxu0 0.0
    %155 = vmatprep.subr.mxu0 0.0
    %156 = vmatpush1.msra.mxu0 0.0
    %157 = vmatprep.subr.mxu0 0.0
    %158 = vmatpush1.msra.mxu0 0.0
    %159 = vmatprep.subr.mxu0 0.0
    %160 = vmatpush1.msra.mxu0 0.0
    %161 = vmatprep.subr.mxu0 0.0
    %162 = vmatpush1.msra.mxu0 0.0
    %163 = vmatprep.subr.mxu0 0.0
    %164 = vmatpush1.msra.mxu0 0.0
    %165 = vmatprep.subr.mxu0 0.0
    %166 = vmatpush1.msra.mxu0 0.0
    %167 = vmatprep.subr.mxu0 0.0
    %168 = vmatpush1.msra.mxu0 0.0
    %169 = vmatprep.subr.mxu0 0.0
    %170 = vmatpush1.msra.mxu0 0.0
    %171 = vmatprep.subr.mxu0 0.0
    %172 = vmatpush1.msra.mxu0 0.0
    %173 = vmatprep.subr.mxu0 0.0
    %174 = vmatpush1.msra.mxu0 0.0
    %175 = vmatprep.subr.mxu0 0.0
    %176 = vmatpush1.msra.mxu0 0.0
    %177 = vmatprep.subr.mxu0 0.0
    %178 = vmatpush1.msra.mxu0 0.0
    %179 = vmatprep.subr.mxu0 0.0
    %180 = vmatpush1.msra.mxu0 0.0
    %181 = vmatprep.subr.mxu0 0.0
    %182 = vmatpush1.msra.mxu0 0.0
    %183 = vmatprep.subr.mxu0 0.0
    %184 = vmatpush1.msra.mxu0 0.0
    %185 = vmatprep.subr.mxu0 0.0
    %186 = vmatpush1.msra.mxu0 0.0
    %187 = vmatprep.subr.mxu0 0.0
    %188 = vmatpush1.msra.mxu0 0.0
    %189 = vmatprep.subr.mxu0 0.0
    %190 = vmatpush1.msra.mxu0 0.0
    %191 = vmatprep.subr.mxu0 0.0
    %192 = vmatpush1.msra.mxu0 0.0
    %193 = vmatprep.subr.mxu0 0.0
    %194 = vmatpush1.msra.mxu0 0.0
    %195 = vmatprep.subr.mxu0 0.0
    %196 = vmatpush1.msra.mxu0 0.0
    %197 = vmatprep.subr.mxu0 0.0
    %198 = vmatpush1.msra.mxu0 0.0
    %199 = vmatprep.subr.mxu0 0.0
    %200 = vmatpush1.msra.mxu0 0.0
    %201 = vmatprep.subr.mxu0 0.0
    %202 = vmatpush1.msra.mxu0 0.0
    %203 = vmatprep.subr.mxu0 0.0
    %204 = vmatpush1.msra.mxu0 0.0
    %205 = vmatprep.subr.mxu0 0.0
    %206 = vmatpush1.msra.mxu0 0.0
    %207 = vmatprep.mubr.f32.mxu0 0.0
    %208 = vmatmul.mubr.f32.gmra.mrb[0].mxu0 %v64
    %v209 = vpop.f32.mrb[0].mxu0
    %v210 = vadd.f32 0.0, %v209
    %v211 = vpop.f32.mrb[0].mxu0
    %212 = vdwg.mxu0
    %v213 = vpack.c.bf16 %v210, %v210
    %vm214 = vcmask 519168
    %215 = vst.msk [vmem:[#allocation9] sm:$0xf] %vm214, %v213
    // Predicated region
    $region26: #{tpu_custom_call.1} parent=1 // pred_check
      _
    $region27: #{tpu_custom_call.1} parent=1 // pred_check_branch
      %217 = sbr.rel (0) target = $region29
    $region28: #{tpu_custom_call.1} parent=1 // pred_region
      %s219 = ssub.s32 64, 64
      %220 = vsyncadd [#allocation4], %s219
      %s222 = sshll.u32 [#allocation8], 4
      %s223 = int_to_ptr.vmem [resolvable:$true] %s222
      %225 = dma.vmem_to_hbm [thread:$0]  %s223, 64, %s3, [#allocation4]
    $region29: #{tpu_custom_call.1} parent=1 // pred_fallthru
      _
    // Predicated region
    $region30: #{tpu_custom_call.1} parent=1 // pred_check
      _
    $region31: #{tpu_custom_call.1} parent=1 // pred_check_branch
      %227 = sbr.rel (0) target = $region33
    $region32: #{tpu_custom_call.1} parent=1 // pred_region
      %s229 = ssub.s32 64, 64
      %230 = vsyncadd [#allocation10], %s229
      %s232 = sshll.u32 [#allocation9], 4
      %s233 = int_to_ptr.vmem [resolvable:$true] %s232
      %235 = dma.vmem_to_hbm [thread:$0]  %s233, 64, %s4, [#allocation10]
    $region33: #{tpu_custom_call.1} parent=1 // pred_fallthru
      _
    // Predicated region
    $region34: #{tpu_custom_call.1} parent=1 // pred_check
      _
    $region35: #{tpu_custom_call.1} parent=1 // pred_check_branch
      %237 = sbr.rel (0) target = $region37
    $region36: #{tpu_custom_call.1} parent=1 // pred_region
      %238 = dma.done [#allocation4], 64
    $region37: #{tpu_custom_call.1} parent=1 // pred_fallthru
      _
    // Predicated region
    $region38: #{tpu_custom_call.1} parent=1 // pred_check
      _
    $region39: #{tpu_custom_call.1} parent=1 // pred_check_branch
      %240 = sbr.rel (0) target = $region41
    $region40: #{tpu_custom_call.1} parent=1 // pred_region
      %241 = dma.done [#allocation10], 64
    $region41: #{tpu_custom_call.1} parent=1 // pred_fallthru
      _
    %242 = vsyncpa [#allocation3], 1
    %243 = vsyncpa [#allocation6], 1
    %244 = vsyncpa [#allocation4], 1
    %245 = vsyncpa [#allocation10], 1

</llo_original>
